<compile_context>
chip_gen: v7x
topology: tpu7x:2x2x1
jax: 0.10.0
libtpu: 0.0.40
codegen_flags: <defaults>
</compile_context>

<pallas_src>
import functools

import jax
import jax.numpy as jnp
import numpy as np
from jax.experimental import pallas as pl
from jax.experimental.pallas import tpu as pltpu

KH = KW = 4
STRIDE = 2
PAD = 1
LANE = 128                         # lane width; output-channel padding target
VMEM_BUDGET = 40 * 1024 * 1024     # per-step working-set target (fits v7x 64 MiB / v5e 128 MiB)


def _round_up(x, m):
    return (x + m - 1) // m * m


def _estimate_vmem_bytes(nb, th, wo, hh, wh, cin, tn, out_bytes):
    """Rough per-step VMEM footprint: double-buffered blocks + in-kernel intermediates."""
    cin4 = 4 * cin
    in_block = nb * hh * wh * cin4 * 2            # bf16 s2d input (whole image per batch elem)
    w_block = KH * KW * cin * tn * 2              # bf16 weights
    bias_block = tn * 4
    out_block = nb * th * wo * tn * out_bytes
    m = nb * th * wo
    interm = m * cin4 * 2 + 2 * m * tn * 4        # one tap slice + f32 accumulator/epilogue
    return 2 * (in_block + w_block + bias_block + out_block) + interm


def _pick_tn(cin, cout_pad, budget=VMEM_BUDGET):
    """Largest lane-multiple Cout tile whose double-buffered weight block stays small."""
    w_rows = KH * KW * cin
    for tn in (cout_pad, 2048, 1024, 512, 256, 128):
        if tn <= cout_pad and cout_pad % tn == 0 and 2 * w_rows * tn * 2 <= budget // 3:
            return tn
    return LANE


def _pick_band_and_fold(n, ho, wo, hh, wh, cin, tn, out_bytes, budget=VMEM_BUDGET):
    """Largest row band th (divisor of ho, th*wo % 8 == 0 unless th == ho) fitting the
    VMEM budget; fold the batch into one grid step for tiny feature maps."""
    divisors = [d for d in range(1, ho + 1) if ho % d == 0]
    th = None
    for d in sorted(divisors, reverse=True):
        if d != ho and (d * wo) % 8 != 0:
            continue
        if _estimate_vmem_bytes(1, d, wo, hh, wh, cin, tn, out_bytes) <= budget:
            th = d
            break
    if th is None:                                 # fall back to smallest aligned band
        th = next(d for d in divisors if d == ho or (d * wo) % 8 == 0)
    nb = 1
    if (th == ho and n > 1 and ho * wo < 256
            and _estimate_vmem_bytes(n, ho, wo, hh, wh, cin, tn, out_bytes) <= budget):
        nb = n                                     # tiny tail layers: one grid step over the batch
    return nb, th


def _conv_band_kernel(x_ref, w_ref, bias_ref, o_ref, *, nb, th, wo, cin, act):
    """Fused conv(k4,s2,p1) + bias + activation for one (batch-group, cout-tile, row-band).

    x_ref:    (nb, Hh, Wh, 4*Cin)   s2d padded input (bf16)
    w_ref:    (16*Cin, tn)          reordered weights [r][c][ph][pw][cin], BN scale folded (bf16)
    bias_ref: (1, tn)               fused conv-bias / BN shift (f32)
    o_ref:    (nb, th*wo, tn)       output band (bf16 hidden layers, f32 last layer)
    """
    cin4 = 4 * cin
    band = pl.program_id(2)
    oh0 = band * th

    # th+1 space-to-depth rows feed output rows [oh0, oh0 + th).
    xb = x_ref[:, pl.ds(oh0, th + 1)]                         # (nb, th+1, Wh, 4*Cin)

    # Four accumulating MXU matmuls, one per 2x2 group of conv taps.  Avoids
    # materializing a (M, 16*Cin) patches tensor / lane-misaligned concatenation.
    m = nb * th * wo
    tn = o_ref.shape[-1]
    acc = jnp.zeros((m, tn), jnp.float32)
    for r in range(2):
        for c in range(2):
            sl = xb[:, r:r + th, c:c + wo, :].reshape(m, cin4)        # bf16 (M, 4*Cin)
            wblk = w_ref[pl.ds((2 * r + c) * cin4, cin4), :]          # bf16 (4*Cin, tn)
            acc = acc + jnp.dot(sl, wblk, preferred_element_type=jnp.float32)

    # f32 epilogue (BN scale already folded into the weights).
    y = acc + bias_ref[...]
    if act == "leaky_relu":
        y = jnp.where(y >= 0, y, 0.2 * y)
    else:  # "sigmoid"
        y = jax.nn.sigmoid(y)
    o_ref[...] = y.reshape(o_ref.shape).astype(o_ref.dtype)


def conv_block(x_nhwc, w_flat, bias, act, out_dtype):
    """Conv2d(k=4, s=2, p=1) + (folded-BN) bias + activation in one Pallas call.

    x_nhwc: (N, H, W, Cin) activation (cast to bf16 here)
    w_flat: (16*Cin, Cout_pad) bf16 reordered weights (BN scale folded in)
    bias:   (1, Cout_pad) f32
    Returns (N, Ho*Wo, Cout_pad) `out_dtype`; caller slices off the channel padding.
    """
    N, H, W, Cin = x_nhwc.shape
    Ho = (H + 2 * PAD - KH) // STRIDE + 1
    Wo = (W + 2 * PAD - KW) // STRIDE + 1
    Cout_pad = w_flat.shape[1]

    # glue: conv zero-pad + space-to-depth (pure layout, done in bf16 to halve HBM traffic).
    # TODO(synk): emit each layer's output directly in the next layer's padded s2d layout
    # inside the kernel to remove this per-layer XLA pad/transpose pass entirely.
    Hp, Wp = H + 2 * PAD, W + 2 * PAD
    Hpe, Wpe = _round_up(Hp, 2), _round_up(Wp, 2)
    xb16 = x_nhwc.astype(jnp.bfloat16)
    xp = jnp.pad(xb16, ((0, 0), (PAD, PAD + Hpe - Hp), (PAD, PAD + Wpe - Wp), (0, 0)))
    Hh, Wh = Hpe // 2, Wpe // 2
    xs = (xp.reshape(N, Hh, 2, Wh, 2, Cin)
            .transpose(0, 1, 3, 2, 4, 5)
            .reshape(N, Hh, Wh, 4 * Cin))

    out_bytes = 4 if out_dtype == jnp.float32 else 2
    tn = _pick_tn(Cin, Cout_pad)
    nb, th = _pick_band_and_fold(N, Ho, Wo, Hh, Wh, Cin, tn, out_bytes)
    n_groups = N // nb
    n_bands = Ho // th
    n_ctiles = Cout_pad // tn

    est = _estimate_vmem_bytes(nb, th, Wo, Hh, Wh, Cin, tn, out_bytes)
    vmem_limit = int(min(max(est * 3 // 2, 32 << 20), 64 << 20))

    kern = functools.partial(_conv_band_kernel, nb=nb, th=th, wo=Wo, cin=Cin, act=act)

    # TODO(synk): single-buffer the grid-invariant weight/bias blocks
    # (pipeline_mode=pl.Buffered(1)) once verified across target generations.
    # TODO(synk): for very large feature maps, switch the input spec to a halo'd
    # (th+1)-row band via memory_space=pl.ANY + manual double-buffered DMA.
    return pl.pallas_call(
        kern,
        out_shape=jax.ShapeDtypeStruct((N, Ho * Wo, Cout_pad), out_dtype),
        # band axis fastest: weight / bias / input blocks stay resident across bands
        grid=(n_groups, n_ctiles, n_bands),
        in_specs=[
            pl.BlockSpec((nb, Hh, Wh, 4 * Cin), lambda g, j, b: (g, 0, 0, 0)),
            pl.BlockSpec((KH * KW * Cin, tn), lambda g, j, b: (0, j)),
            pl.BlockSpec((1, tn), lambda g, j, b: (0, j)),
        ],
        out_specs=pl.BlockSpec((nb, th * Wo, tn), lambda g, j, b: (g, b, j)),
        compiler_params=pltpu.CompilerParams(
            dimension_semantics=("parallel", "parallel", "parallel"),
            vmem_limit_bytes=vmem_limit),
    )(xs, w_flat, bias)


def _clamp(value, max_value):
    return max_value if value > max_value else value


def init_params(key, in_channels, n_blocks=3, expansion=2, max_filter_size=2048):
    """Deterministic parameter init mirroring the module's __init__ / weights_init."""
    chans = []
    filter_size = in_channels * expansion
    chans.append((in_channels, filter_size, False))              # conv + LeakyReLU
    for _ in range(n_blocks - 2):
        in_size = filter_size
        out_size = _clamp(filter_size * expansion, max_filter_size)
        chans.append((in_size, out_size, True))                  # conv + BN + LeakyReLU + Dropout
        filter_size = out_size
    chans.append((filter_size, 1, False))                        # conv + Sigmoid

    params = []
    for (cin, cout, has_bn) in chans:
        key, k1, k2, k3 = jax.random.split(key, 4)
        w = 0.02 * jax.random.normal(k1, (cout, cin, KH, KW), jnp.float32)  # N(0, 0.02)
        fan_in = cin * KH * KW
        bound = 1.0 / (fan_in ** 0.5)
        b = jax.random.uniform(k2, (cout,), jnp.float32, -bound, bound)
        if has_bn:
            gamma = 1.0 + 0.02 * jax.random.normal(k3, (cout,), jnp.float32)  # N(1, 0.02)
            beta = jnp.zeros((cout,), jnp.float32)
            rm = jnp.zeros((cout,), jnp.float32)
            rv = jnp.ones((cout,), jnp.float32)
        else:
            gamma = beta = rm = rv = None
        params.append(dict(w=w, b=b, gamma=gamma, beta=beta, rm=rm, rv=rv,
                           has_bn=has_bn))
    return params


def feature_discriminator_forward(x_nchw, params, eps=1e-5):
    """Forward pass (eval-mode semantics).  Input/output are NCHW like PyTorch."""
    x = jnp.transpose(x_nchw, (0, 2, 3, 1))   # NCHW -> NHWC
    n_layers = len(params)
    for i, p in enumerate(params):
        w, b = p["w"], p["b"]
        cout, cin = w.shape[0], w.shape[1]
        cout_pad = _round_up(cout, LANE)

        # Reorder conv weights to the kernel's s2d patch layout [r][c][ph][pw][cin];
        # fold the BatchNorm scale into the f32 weight columns before the bf16 cast
        # so the in-kernel epilogue is a single add.
        w_r = (w.reshape(cout, cin, 2, 2, 2, 2)
                 .transpose(2, 4, 3, 5, 1, 0)
                 .reshape(KH * KW * cin, cout))
        if p["has_bn"]:
            s = p["gamma"] / jnp.sqrt(p["rv"] + eps)
            eff_bias = s * (b - p["rm"]) + p["beta"]
            w_r = w_r * s[None, :]
        else:
            eff_bias = b
        w_flat = jnp.pad(w_r, ((0, 0), (0, cout_pad - cout))).astype(jnp.bfloat16)
        bias = jnp.pad(eff_bias, (0, cout_pad - cout)).reshape(1, cout_pad).astype(jnp.float32)

        is_last = i == n_layers - 1
        act = "sigmoid" if is_last else "leaky_relu"
        out_dtype = jnp.float32 if is_last else jnp.bfloat16     # hidden activations stay bf16

        N, H, W = x.shape[0], x.shape[1], x.shape[2]
        Ho = (H + 2 * PAD - KH) // STRIDE + 1
        Wo = (W + 2 * PAD - KW) // STRIDE + 1
        y = conv_block(x, w_flat, bias, act, out_dtype)          # (N, Ho*Wo, cout_pad)
        x = y[:, :, :cout].reshape(N, Ho, Wo, cout)
    return jnp.transpose(x, (0, 3, 1, 2))                        # NHWC -> NCHW


def reference_forward(x_nchw, params, eps=1e-5):
    """Pure-JAX f32 reference (same eval-mode semantics) for correctness checking."""
    x = x_nchw
    n_layers = len(params)
    for i, p in enumerate(params):
        y = jax.lax.conv_general_dilated(
            x, p["w"], window_strides=(STRIDE, STRIDE),
            padding=((PAD, PAD), (PAD, PAD)),
            dimension_numbers=("NCHW", "OIHW", "NCHW"),
            precision=jax.lax.Precision.HIGHEST)
        y = y + p["b"][None, :, None, None]
        if p["has_bn"]:
            s = (p["gamma"] / jnp.sqrt(p["rv"] + eps))[None, :, None, None]
            y = s * (y - p["rm"][None, :, None, None]) + p["beta"][None, :, None, None]
        if i == n_layers - 1:
            y = jax.nn.sigmoid(y)
        else:
            y = jnp.where(y >= 0, y, 0.2 * y)
        x = y
    return x


if __name__ == "__main__":
    key = jax.random.PRNGKey(0)
    kx, kp = jax.random.split(key)

    # small shapes consistent with the module: batch=2, in_channels=4, spatial=16
    x = jax.random.normal(kx, (2, 4, 16, 16), jnp.float32)   # NCHW, like PyTorch
    params = init_params(kp, in_channels=4, n_blocks=3, expansion=2)

    out = feature_discriminator_forward(x, params)
    out = jax.block_until_ready(out)
    assert out.shape == (2, 1, 2, 2), out.shape

    # Kernel feeds the MXU bf16 operands (f32 accumulate + f32 epilogue) and keeps
    # hidden activations in bf16, so compare against the pure-f32 reference at
    # bf16-level tolerance.
    ref = reference_forward(x, params)
    np.testing.assert_allclose(np.asarray(out), np.asarray(ref), rtol=3e-3, atol=3e-3)

    print("KERNEL_OK")
</pallas_src>

<mosaic_0001>
module attributes {stable_mosaic.version = 11 : i64} {
  func.func @_conv_band_kernel(%arg0: i32, %arg1: i32, %arg2: i32, %arg3: memref<2x9x9x16xbf16, #tpu.memory_space<vmem>>, %arg4: memref<64x128xbf16, #tpu.memory_space<vmem>>, %arg5: memref<1x128xf32, #tpu.memory_space<vmem>>, %arg6: memref<2x64x128xbf16, #tpu.memory_space<vmem>>) attributes {dimension_semantics = [#tpu.dimension_semantics<parallel>, #tpu.dimension_semantics<parallel>, #tpu.dimension_semantics<parallel>], iteration_bounds = array<i64: 1, 1, 1>, scalar_prefetch = 0 : i64, scratch_operands = 0 : i64, tpu.core_type = #tpu.core_type<tc>, window_params = [{transform_indices = @transform_0, window_bounds = array<i64: 2, 9, 9, 16>}, {transform_indices = @transform_1, window_bounds = array<i64: 64, 128>}, {transform_indices = @transform_2, window_bounds = array<i64: 1, 128>}, {transform_indices = @transform_3, window_bounds = array<i64: 2, 64, 128>}]} {
    %c8_i32 = arith.constant 8 : i32
    %0 = arith.muli %arg2, %c8_i32 : i32
    %c0 = arith.constant 0 : index
    %1 = arith.index_cast %0 : i32 to index
    %c0_0 = arith.constant 0 : index
    %c0_1 = arith.constant 0 : index
    %2 = vector.load %arg3[%c0, %1, %c0_0, %c0_1] : memref<2x9x9x16xbf16, #tpu.memory_space<vmem>>, vector<2x9x9x16xbf16>
    %cst = arith.constant 0.000000e+00 : f32
    %3 = vector.broadcast %cst : f32 to vector<128x128xf32>
    %4 = vector.extract_strided_slice %2 {offsets = [0, 0, 0, 0], sizes = [2, 8, 8, 16], strides = [1, 1, 1, 1]} : vector<2x9x9x16xbf16> to vector<2x8x8x16xbf16>
    %5 = vector.shape_cast %4 : vector<2x8x8x16xbf16> to vector<128x16xbf16>
    %c0_2 = arith.constant 0 : index
    %c0_3 = arith.constant 0 : index
    %6 = vector.load %arg4[%c0_2, %c0_3] : memref<64x128xbf16, #tpu.memory_space<vmem>>, vector<16x128xbf16>
    %cst_4 = arith.constant dense<0.000000e+00> : vector<128x128xf32>
    %7 = tpu.matmul %5, %6, %cst_4 {dimension_numbers = #tpu.dot_dimension_numbers<[1], [0], [0], [1], [0, 0, 1, 1], [], []>} : vector<128x16xbf16>, vector<16x128xbf16>, vector<128x128xf32> -> vector<128x128xf32>
    %8 = arith.addf %3, %7 : vector<128x128xf32>
    %9 = vector.extract_strided_slice %2 {offsets = [0, 0, 1, 0], sizes = [2, 8, 8, 16], strides = [1, 1, 1, 1]} : vector<2x9x9x16xbf16> to vector<2x8x8x16xbf16>
    %10 = vector.shape_cast %9 : vector<2x8x8x16xbf16> to vector<128x16xbf16>
    %c16 = arith.constant 16 : index
    %c0_5 = arith.constant 0 : index
    %11 = vector.load %arg4[%c16, %c0_5] : memref<64x128xbf16, #tpu.memory_space<vmem>>, vector<16x128xbf16>
    %cst_6 = arith.constant dense<0.000000e+00> : vector<128x128xf32>
    %12 = tpu.matmul %10, %11, %cst_6 {dimension_numbers = #tpu.dot_dimension_numbers<[1], [0], [0], [1], [0, 0, 1, 1], [], []>} : vector<128x16xbf16>, vector<16x128xbf16>, vector<128x128xf32> -> vector<128x128xf32>
    %13 = arith.addf %8, %12 : vector<128x128xf32>
    %14 = vector.extract_strided_slice %2 {offsets = [0, 1, 0, 0], sizes = [2, 8, 8, 16], strides = [1, 1, 1, 1]} : vector<2x9x9x16xbf16> to vector<2x8x8x16xbf16>
    %15 = vector.shape_cast %14 : vector<2x8x8x16xbf16> to vector<128x16xbf16>
    %c32 = arith.constant 32 : index
    %c0_7 = arith.constant 0 : index
    %16 = vector.load %arg4[%c32, %c0_7] : memref<64x128xbf16, #tpu.memory_space<vmem>>, vector<16x128xbf16>
    %cst_8 = arith.constant dense<0.000000e+00> : vector<128x128xf32>
    %17 = tpu.matmul %15, %16, %cst_8 {dimension_numbers = #tpu.dot_dimension_numbers<[1], [0], [0], [1], [0, 0, 1, 1], [], []>} : vector<128x16xbf16>, vector<16x128xbf16>, vector<128x128xf32> -> vector<128x128xf32>
    %18 = arith.addf %13, %17 : vector<128x128xf32>
    %19 = vector.extract_strided_slice %2 {offsets = [0, 1, 1, 0], sizes = [2, 8, 8, 16], strides = [1, 1, 1, 1]} : vector<2x9x9x16xbf16> to vector<2x8x8x16xbf16>
    %20 = vector.shape_cast %19 : vector<2x8x8x16xbf16> to vector<128x16xbf16>
    %c48 = arith.constant 48 : index
    %c0_9 = arith.constant 0 : index
    %21 = vector.load %arg4[%c48, %c0_9] : memref<64x128xbf16, #tpu.memory_space<vmem>>, vector<16x128xbf16>
    %cst_10 = arith.constant dense<0.000000e+00> : vector<128x128xf32>
    %22 = tpu.matmul %20, %21, %cst_10 {dimension_numbers = #tpu.dot_dimension_numbers<[1], [0], [0], [1], [0, 0, 1, 1], [], []>} : vector<128x16xbf16>, vector<16x128xbf16>, vector<128x128xf32> -> vector<128x128xf32>
    %23 = arith.addf %18, %22 : vector<128x128xf32>
    %c0_11 = arith.constant 0 : index
    %c0_12 = arith.constant 0 : index
    %24 = vector.load %arg5[%c0_11, %c0_12] : memref<1x128xf32, #tpu.memory_space<vmem>>, vector<1x128xf32>
    %25 = vector.broadcast %24 : vector<1x128xf32> to vector<128x128xf32>
    %26 = arith.addf %23, %25 : vector<128x128xf32>
    %cst_13 = arith.constant 0.000000e+00 : f32
    %27 = vector.broadcast %cst_13 : f32 to vector<128x128xf32>
    %28 = arith.cmpf oge, %26, %27 : vector<128x128xf32>
    %cst_14 = arith.constant 2.000000e-01 : f32
    %29 = vector.broadcast %cst_14 : f32 to vector<128x128xf32>
    %30 = arith.mulf %29, %26 : vector<128x128xf32>
    %31 = arith.select %28, %26, %30 : vector<128x128xi1>, vector<128x128xf32>
    %32 = vector.shape_cast %31 : vector<128x128xf32> to vector<2x64x128xf32>
    %33 = arith.truncf %32 : vector<2x64x128xf32> to vector<2x64x128xbf16>
    %c0_15 = arith.constant 0 : index
    %c0_16 = arith.constant 0 : index
    %c0_17 = arith.constant 0 : index
    %34 = vector.load %arg6[%c0_15, %c0_16, %c0_17] : memref<2x64x128xbf16, #tpu.memory_space<vmem>>, vector<2x64x128xbf16>
    tpu.vector_store %arg6[%c0_15, %c0_16, %c0_17], %33 {strides = array<i32>} : memref<2x64x128xbf16, #tpu.memory_space<vmem>>, vector<2x64x128xbf16>,
    return
  }
  func.func @transform_0(%arg0: i32, %arg1: i32, %arg2: i32) -> (i32, i32, i32, i32) {
    %c0_i32 = arith.constant 0 : i32
    %c0_i32_0 = arith.constant 0 : i32
    %c0_i32_1 = arith.constant 0 : i32
    %c0_i32_2 = arith.constant 0 : i32
    return %arg0, %c0_i32, %c0_i32_0, %c0_i32_1 : i32, i32, i32, i32
  }
  func.func @transform_1(%arg0: i32, %arg1: i32, %arg2: i32) -> (i32, i32) {
    %c0_i32 = arith.constant 0 : i32
    %c0_i32_0 = arith.constant 0 : i32
    return %c0_i32, %arg1 : i32, i32
  }
  func.func @transform_2(%arg0: i32, %arg1: i32, %arg2: i32) -> (i32, i32) {
    %c0_i32 = arith.constant 0 : i32
    %c0_i32_0 = arith.constant 0 : i32
    return %c0_i32, %arg1 : i32, i32
  }
  func.func @transform_3(%arg0: i32, %arg1: i32, %arg2: i32) -> (i32, i32, i32) {
    %c0_i32 = arith.constant 0 : i32
    return %arg0, %arg2, %arg1 : i32, i32, i32
  }
}

</mosaic_0001>

<llo_original>
// kernel: tpu_custom_call.1
$region0: #{tpu_custom_call.1}
  #allocation0 [shape = 'u32[]', space=smem, size = 0x4, offset = 0x4, fixed_abs, tag = 'smem constant byte address 0x4 - core index']
  #allocation1 [shape = 'u32[144,128]{1,0:T(1,128)}', space=vmem, size = 0x12000, scoped, tag = 'internal scratch']
  %s0 = inlined_call_operand.vmem [shape: bf16[2,9,9,16], index: 0, kind: input, shape index: {}]
  %s1 = inlined_call_operand.vmem [shape: bf16[64,128], index: 1, kind: input, shape index: {}]
  %s2 = inlined_call_operand.vmem [shape: f32[1,128], index: 2, kind: input, shape index: {}]
  %s3 = inlined_call_operand.hbm [shape: bf16[2,64,128], index: 3, kind: output, shape index: {}]
  %s4 = sld [smem:[#allocation0]]
  $region22: #{tpu_custom_call.1} parent=0
    _
  %s6 = ssub.s32 1, %s4
  %s7 = scalar_select 0, %s6, %s4
  $region1: #{tpu_custom_call.1} parent=0
    #allocation2 [shape = 'u8[32768]{0}', space=vmem, size = 0x8000, scoped, tag = 'output window, operand 0, single buffered']
    #allocation3 [shape = 's32[1]{0}', space=sflag, size = 0x4, scoped, tag = 'scoped memory for tpu_custom_call.1']
    %8 = vsyncpa [#allocation3], 0
    // Predicated region
    $region2: #{tpu_custom_call.1} parent=1 // pred_check
      _
    $region3: #{tpu_custom_call.1} parent=1 // pred_check_branch
      %10 = sbr.rel (0) target = $region5
    $region4: #{tpu_custom_call.1} parent=1 // pred_region
      _
    $region5: #{tpu_custom_call.1} parent=1 // pred_fallthru
      _
    // Predicated region
    $region6: #{tpu_custom_call.1} parent=1 // pred_check
      _
    $region7: #{tpu_custom_call.1} parent=1 // pred_check_branch
      %12 = sbr.rel (0) target = $region9
    $region8: #{tpu_custom_call.1} parent=1 // pred_region
      _
    $region9: #{tpu_custom_call.1} parent=1 // pred_fallthru
      _
    // Predicated region
    $region10: #{tpu_custom_call.1} parent=1 // pred_check
      _
    $region11: #{tpu_custom_call.1} parent=1 // pred_check_branch
      %14 = sbr.rel (0) target = $region13
    $region12: #{tpu_custom_call.1} parent=1 // pred_region
      _
    $region13: #{tpu_custom_call.1} parent=1 // pred_fallthru
      _
    %s16 = smul.u32 0, 8
    %s17 = smul.u32 %s16, 2
    %s18 = smul.addr %s17, 4
    %s19 = scalar_lea.vmem %s0, %s18
    %v20 = vld [vmem:[%s19] sm:$0xf]
    %v21 = vld [vmem:[%s19 + $0x4] sm:$0x1]
    %v22 = vld [vmem:[%s19 + $0x8] sm:$0xf]
    %v23 = vld [vmem:[%s19 + $0xc] sm:$0x1]
    %v24 = vld [vmem:[%s19 + $0x10] sm:$0xf]
    %v25 = vld [vmem:[%s19 + $0x14] sm:$0x1]
    %v26 = vld [vmem:[%s19 + $0x18] sm:$0xf]
    %v27 = vld [vmem:[%s19 + $0x1c] sm:$0x1]
    %v28 = vld [vmem:[%s19 + $0x20] sm:$0xf]
    %v29 = vld [vmem:[%s19 + $0x24] sm:$0x1]
    %v30 = vld [vmem:[%s19 + $0x28] sm:$0xf]
    %v31 = vld [vmem:[%s19 + $0x2c] sm:$0x1]
    %v32 = vld [vmem:[%s19 + $0x30] sm:$0xf]
    %v33 = vld [vmem:[%s19 + $0x34] sm:$0x1]
    %v34 = vld [vmem:[%s19 + $0x38] sm:$0xf]
    %v35 = vld [vmem:[%s19 + $0x3c] sm:$0x1]
    %v36 = vld [vmem:[%s19 + $0x40] sm:$0xf]
    %v37 = vld [vmem:[%s19 + $0x44] sm:$0x1]
    %v38 = vld [vmem:[%s19 + $0x48] sm:$0xf]
    %v39 = vld [vmem:[%s19 + $0x4c] sm:$0x1]
    %v40 = vld [vmem:[%s19 + $0x50] sm:$0xf]
    %v41 = vld [vmem:[%s19 + $0x54] sm:$0x1]
    %v42 = vld [vmem:[%s19 + $0x58] sm:$0xf]
    %v43 = vld [vmem:[%s19 + $0x5c] sm:$0x1]
    %v44 = vld [vmem:[%s19 + $0x60] sm:$0xf]
    %v45 = vld [vmem:[%s19 + $0x64] sm:$0x1]
    %v46 = vld [vmem:[%s19 + $0x68] sm:$0xf]
    %v47 = vld [vmem:[%s19 + $0x6c] sm:$0x1]
    %v48 = vld [vmem:[%s19 + $0x70] sm:$0xf]
    %v49 = vld [vmem:[%s19 + $0x74] sm:$0x1]
    %v50 = vld [vmem:[%s19 + $0x78] sm:$0xf]
    %v51 = vld [vmem:[%s19 + $0x7c] sm:$0x1]
    %v52 = vld [vmem:[%s19 + $0x80] sm:$0xf]
    %v53 = vld [vmem:[%s19 + $0x84] sm:$0x1]
    %v54 = vld [vmem:[%s19 + $0x88] sm:$0xf]
    %v55 = vld [vmem:[%s19 + $0x8c] sm:$0x1]
    %v56 = vld [vmem:[%s1] sm:$0xf]
    %v57 = vld [vmem:[%s1 + $0x4] sm:$0xf]
    %vm58 = vsmask.f32 3328
    %vm59 = vsmask.f32 7440
    %vm60 = vmor %vm58, %vm59
    %v62 = vshrl.u32 %v20, 16
    %v64 = vrot.slane %v62, 4
    %v65 = vshll.u32 %v20, 16
    %v67 = vrot.slane %v65, 5
    %v68 = vor.u32 %v64, %v67
    %v69 = vrot.slane %v68, 4
    %v71 = vshll.u32 %v21, 16
    %v73 = vrot.slane %v71, 5
    %v74 = vsel %vm60, %v69, %v73
    %v76 = vshrl.u32 %v22, 16
    %v78 = vrot.slane %v76, 4
    %v79 = vshll.u32 %v22, 16
    %v81 = vrot.slane %v79, 5
    %v82 = vor.u32 %v78, %v81
    %v83 = vrot.slane %v82, 4
    %v85 = vshll.u32 %v23, 16
    %v87 = vrot.slane %v85, 5
    %v88 = vsel %vm60, %v83, %v87
    %v90 = vshrl.u32 %v24, 16
    %v92 = vrot.slane %v90, 4
    %v93 = vshll.u32 %v24, 16
    %v95 = vrot.slane %v93, 5
    %v96 = vor.u32 %v92, %v95
    %v97 = vrot.slane %v96, 4
    %v99 = vshll.u32 %v25, 16
    %v101 = vrot.slane %v99, 5
    %v102 = vsel %vm60, %v97, %v101
    %v104 = vshrl.u32 %v26, 16
    %v106 = vrot.slane %v104, 4
    %v107 = vshll.u32 %v26, 16
    %v109 = vrot.slane %v107, 5
    %v110 = vor.u32 %v106, %v109
    %v111 = vrot.slane %v110, 4
    %v113 = vshll.u32 %v27, 16
    %v115 = vrot.slane %v113, 5
    %v116 = vsel %vm60, %v111, %v115
    %v118 = vshrl.u32 %v28, 16
    %v120 = vrot.slane %v118, 4
    %v121 = vshll.u32 %v28, 16
    %v123 = vrot.slane %v121, 5
    %v124 = vor.u32 %v120, %v123
    %v125 = vrot.slane %v124, 4
    %v127 = vshll.u32 %v29, 16
    %v129 = vrot.slane %v127, 5
    %v130 = vsel %vm60, %v125, %v129
    %v132 = vshrl.u32 %v30, 16
    %v134 = vrot.slane %v132, 4
    %v135 = vshll.u32 %v30, 16
    %v137 = vrot.slane %v135, 5
    %v138 = vor.u32 %v134, %v137
    %v139 = vrot.slane %v138, 4
    %v141 = vshll.u32 %v31, 16
    %v143 = vrot.slane %v141, 5
    %v144 = vsel %vm60, %v139, %v143
    %v146 = vshrl.u32 %v32, 16
    %v148 = vrot.slane %v146, 4
    %v149 = vshll.u32 %v32, 16
    %v151 = vrot.slane %v149, 5
    %v152 = vor.u32 %v148, %v151
    %v153 = vrot.slane %v152, 4
    %v155 = vshll.u32 %v33, 16
    %v157 = vrot.slane %v155, 5
    %v158 = vsel %vm60, %v153, %v157
    %v160 = vshrl.u32 %v34, 16
    %v162 = vrot.slane %v160, 4
    %v163 = vshll.u32 %v34, 16
    %v165 = vrot.slane %v163, 5
    %v166 = vor.u32 %v162, %v165
    %v167 = vrot.slane %v166, 4
    %v169 = vshll.u32 %v35, 16
    %v171 = vrot.slane %v169, 5
    %v172 = vsel %vm60, %v167, %v171
    %v174 = vshrl.u32 %v38, 16
    %v176 = vrot.slane %v174, 4
    %v177 = vshll.u32 %v38, 16
    %v179 = vrot.slane %v177, 5
    %v180 = vor.u32 %v176, %v179
    %v181 = vrot.slane %v180, 4
    %v183 = vshll.u32 %v39, 16
    %v185 = vrot.slane %v183, 5
    %v186 = vsel %vm60, %v181, %v185
    %v188 = vshrl.u32 %v40, 16
    %v190 = vrot.slane %v188, 4
    %v191 = vshll.u32 %v40, 16
    %v193 = vrot.slane %v191, 5
    %v194 = vor.u32 %v190, %v193
    %v195 = vrot.slane %v194, 4
    %v197 = vshll.u32 %v41, 16
    %v199 = vrot.slane %v197, 5
    %v200 = vsel %vm60, %v195, %v199
    %v202 = vshrl.u32 %v42, 16
    %v204 = vrot.slane %v202, 4
    %v205 = vshll.u32 %v42, 16
    %v207 = vrot.slane %v205, 5
    %v208 = vor.u32 %v204, %v207
    %v209 = vrot.slane %v208, 4
    %v211 = vshll.u32 %v43, 16
    %v213 = vrot.slane %v211, 5
    %v214 = vsel %vm60, %v209, %v213
    %v216 = vshrl.u32 %v44, 16
    %v218 = vrot.slane %v216, 4
    %v219 = vshll.u32 %v44, 16
    %v221 = vrot.slane %v219, 5
    %v222 = vor.u32 %v218, %v221
    %v223 = vrot.slane %v222, 4
    %v225 = vshll.u32 %v45, 16
    %v227 = vrot.slane %v225, 5
    %v228 = vsel %vm60, %v223, %v227
    %v230 = vshrl.u32 %v46, 16
    %v232 = vrot.slane %v230, 4
    %v233 = vshll.u32 %v46, 16
    %v235 = vrot.slane %v233, 5
    %v236 = vor.u32 %v232, %v235
    %v237 = vrot.slane %v236, 4
    %v239 = vshll.u32 %v47, 16
    %v241 = vrot.slane %v239, 5
    %v242 = vsel %vm60, %v237, %v241
    %v244 = vshrl.u32 %v48, 16
    %v246 = vrot.slane %v244, 4
    %v247 = vshll.u32 %v48, 16
    %v249 = vrot.slane %v247, 5
    %v250 = vor.u32 %v246, %v249
    %v251 = vrot.slane %v250, 4
    %v253 = vshll.u32 %v49, 16
    %v255 = vrot.slane %v253, 5
    %v256 = vsel %vm60, %v251, %v255
    %v258 = vshrl.u32 %v50, 16
    %v260 = vrot.slane %v258, 4
    %v261 = vshll.u32 %v50, 16
    %v263 = vrot.slane %v261, 5
    %v264 = vor.u32 %v260, %v263
    %v265 = vrot.slane %v264, 4
    %v267 = vshll.u32 %v51, 16
    %v269 = vrot.slane %v267, 5
    %v270 = vsel %vm60, %v265, %v269
    %v272 = vshrl.u32 %v52, 16
    %v274 = vrot.slane %v272, 4
    %v275 = vshll.u32 %v52, 16
    %v277 = vrot.slane %v275, 5
    %v278 = vor.u32 %v274, %v277
    %v279 = vrot.slane %v278, 4
    %v281 = vshll.u32 %v53, 16
    %v283 = vrot.slane %v281, 5
    %v284 = vsel %vm60, %v279, %v283
    %v285 = vld [vmem:[%s1 + $0x8] sm:$0xf]
    %v286 = vld [vmem:[%s1 + $0xc] sm:$0xf]
    %v287 = vunpack.c.l.b16 %v74
    %v288 = vunpack.c.l.b16 %v88
    %v289 = vunpack.c.l.b16 %v102
    %v290 = vunpack.c.l.b16 %v116
    %v291 = vunpack.c.l.b16 %v130
    %v292 = vunpack.c.l.b16 %v144
    %v293 = vunpack.c.l.b16 %v158
    %v294 = vunpack.c.l.b16 %v172
    %v295 = vunpack.c.l.b16 %v186
    %v296 = vunpack.c.l.b16 %v200
    %v297 = vunpack.c.l.b16 %v214
    %v298 = vunpack.c.l.b16 %v228
    %v299 = vunpack.c.l.b16 %v242
    %v300 = vunpack.c.l.b16 %v256
    %v301 = vunpack.c.l.b16 %v270
    %v302 = vunpack.c.l.b16 %v284
    %v303 = vpack.c.b16 %v288, %v287
    %v304 = vpack.c.b16 %v290, %v289
    %v305 = vpack.c.b16 %v292, %v291
    %v306 = vpack.c.b16 %v294, %v293
    %v307 = vpack.c.b16 %v296, %v295
    %v308 = vpack.c.b16 %v298, %v297
    %v309 = vpack.c.b16 %v300, %v299
    %v310 = vpack.c.b16 %v302, %v301
    %v313 = vunpack.c.l.b16 %v285
    %v314 = vunpack.c.l.b16 %v286
    %v315 = vpack.c.b16 %v314, %v313
    %vm317 = vcmask 130048
    %v319 = vsel %vm317, %v303, 0
    %v322 = vsel %vm317, %v304, 0
    %v325 = vsel %vm317, %v305, 0
    %v328 = vsel %vm317, %v306, 0
    %v331 = vsel %vm317, %v307, 0
    %v334 = vsel %vm317, %v308, 0
    %v337 = vsel %vm317, %v309, 0
    %v340 = vsel %vm317, %v310, 0
    %342 = vmatprep.subr.bf16.mxu0 0
    %343 = vmatpush1.bf16.msra.mxu0 %v315
    %344 = vmatprep.subr.bf16.mxu0 0
    %345 = vmatpush1.bf16.msra.mxu0 0
    %346 = vmatprep.subr.bf16.mxu0 0
    %347 = vmatpush1.bf16.msra.mxu0 0
    %348 = vmatprep.subr.bf16.mxu0 0
    %349 = vmatpush1.bf16.msra.mxu0 0
    %350 = vmatprep.subr.bf16.mxu0 0
    %351 = vmatpush1.bf16.msra.mxu0 0
    %352 = vmatprep.subr.bf16.mxu0 0
    %353 = vmatpush1.bf16.msra.mxu0 0
    %354 = vmatprep.subr.bf16.mxu0 0
    %355 = vmatpush1.bf16.msra.mxu0 0
    %356 = vmatprep.subr.bf16.mxu0 0
    %357 = vmatpush1.bf16.msra.mxu0 0
    %358 = vmatprep.subr.bf16.mxu0 0
    %359 = vmatpush1.bf16.msra.mxu0 0
    %360 = vmatprep.subr.bf16.mxu0 0
    %361 = vmatpush1.bf16.msra.mxu0 0
    %362 = vmatprep.subr.bf16.mxu0 0
    %363 = vmatpush1.bf16.msra.mxu0 0
    %364 = vmatprep.subr.bf16.mxu0 0
    %365 = vmatpush1.bf16.msra.mxu0 0
    %366 = vmatprep.subr.bf16.mxu0 0
    %367 = vmatpush1.bf16.msra.mxu0 0
    %368 = vmatprep.subr.bf16.mxu0 0
    %369 = vmatpush1.bf16.msra.mxu0 0
    %370 = vmatprep.subr.bf16.mxu0 0
    %371 = vmatpush1.bf16.msra.mxu0 0
    %372 = vmatprep.subr.bf16.mxu0 0
    %373 = vmatpush1.bf16.msra.mxu0 0
    %374 = vmatprep.mubr.bf16.mxu0 0
    %375 = vmatmul.mubr.bf16.gmra.mrb[0].mxu0 %v319
    %v376 = vpop.f32.mrb[0].mxu0
    %v377 = vadd.f32 0.0, %v376
    %v378 = vpop.f32.mrb[0].mxu0
    %v379 = vpop.f32.mrb[0].mxu0
    %v380 = vadd.f32 0.0, %v379
    %v381 = vpop.f32.mrb[0].mxu0
    %382 = vmatprep.mubr.bf16.mxu0 0
    %383 = vmatmul.mubr.bf16.gmra.mrb[0].mxu0 %v322
    %v384 = vpop.f32.mrb[0].mxu0
    %v385 = vadd.f32 0.0, %v384
    %v386 = vpop.f32.mrb[0].mxu0
    %v387 = vpop.f32.mrb[0].mxu0
    %v388 = vadd.f32 0.0, %v387
    %v389 = vpop.f32.mrb[0].mxu0
    %390 = vmatprep.mubr.bf16.mxu0 0
    %391 = vmatmul.mubr.bf16.gmra.mrb[0].mxu0 %v325
    %v392 = vpop.f32.mrb[0].mxu0
    %v393 = vadd.f32 0.0, %v392
    %v394 = vpop.f32.mrb[0].mxu0
    %v395 = vpop.f32.mrb[0].mxu0
    %v396 = vadd.f32 0.0, %v395
    %v397 = vpop.f32.mrb[0].mxu0
    %398 = vmatprep.mubr.bf16.mxu0 0
    %399 = vmatmul.mubr.bf16.gmra.mrb[0].mxu0 %v328
    %v400 = vpop.f32.mrb[0].mxu0
    %v401 = vadd.f32 0.0, %v400
    %v402 = vpop.f32.mrb[0].mxu0
    %v403 = vpop.f32.mrb[0].mxu0
    %v404 = vadd.f32 0.0, %v403
    %v405 = vpop.f32.mrb[0].mxu0
    %406 = vmatprep.mubr.bf16.mxu0 0
    %407 = vmatmul.mubr.bf16.gmra.mrb[0].mxu0 %v331
    %v408 = vpop.f32.mrb[0].mxu0
    %v409 = vadd.f32 0.0, %v408
    %v410 = vpop.f32.mrb[0].mxu0
    %v411 = vpop.f32.mrb[0].mxu0
    %v412 = vadd.f32 0.0, %v411
    %v413 = vpop.f32.mrb[0].mxu0
    %414 = vmatprep.mubr.bf16.mxu0 0
    %415 = vmatmul.mubr.bf16.gmra.mrb[0].mxu0 %v334
    %v416 = vpop.f32.mrb[0].mxu0
    %v417 = vadd.f32 0.0, %v416
    %v418 = vpop.f32.mrb[0].mxu0
    %v419 = vpop.f32.mrb[0].mxu0
    %v420 = vadd.f32 0.0, %v419
    %v421 = vpop.f32.mrb[0].mxu0
    %422 = vmatprep.mubr.bf16.mxu0 0
    %423 = vmatmul.mubr.bf16.gmra.mrb[0].mxu0 %v337
    %v424 = vpop.f32.mrb[0].mxu0
    %v425 = vadd.f32 0.0, %v424
    %v426 = vpop.f32.mrb[0].mxu0
    %v427 = vpop.f32.mrb[0].mxu0
    %v428 = vadd.f32 0.0, %v427
    %v429 = vpop.f32.mrb[0].mxu0
    %430 = vmatprep.mubr.bf16.mxu0 0
    %431 = vmatmul.mubr.bf16.gmra.mrb[0].mxu0 %v340
    %v432 = vpop.f32.mrb[0].mxu0
    %v433 = vadd.f32 0.0, %v432
    %v434 = vpop.f32.mrb[0].mxu0
    %v435 = vpop.f32.mrb[0].mxu0
    %v436 = vadd.f32 0.0, %v435
    %v437 = vpop.f32.mrb[0].mxu0
    %438 = vdwg.mxu0
    %v455 = vunpack.c.l.b16 %v20
    %v456 = vunpack.c.l.b16 %v22
    %v457 = vunpack.c.l.b16 %v24
    %v458 = vunpack.c.l.b16 %v26
    %v459 = vunpack.c.l.b16 %v28
    %v460 = vunpack.c.l.b16 %v30
    %v461 = vunpack.c.l.b16 %v32
    %v462 = vunpack.c.l.b16 %v34
    %v463 = vunpack.c.l.b16 %v38
    %v464 = vunpack.c.l.b16 %v40
    %v465 = vunpack.c.l.b16 %v42
    %v466 = vunpack.c.l.b16 %v44
    %v467 = vunpack.c.l.b16 %v46
    %v468 = vunpack.c.l.b16 %v48
    %v469 = vunpack.c.l.b16 %v50
    %v470 = vunpack.c.l.b16 %v52
    %v471 = vpack.c.b16 %v456, %v455
    %v472 = vpack.c.b16 %v458, %v457
    %v473 = vpack.c.b16 %v460, %v459
    %v474 = vpack.c.b16 %v462, %v461
    %v475 = vpack.c.b16 %v464, %v463
    %v476 = vpack.c.b16 %v466, %v465
    %v477 = vpack.c.b16 %v468, %v467
    %v478 = vpack.c.b16 %v470, %v469
    %v481 = vunpack.c.l.b16 %v56
    %v482 = vunpack.c.l.b16 %v57
    %v483 = vpack.c.b16 %v482, %v481
    %v486 = vsel %vm317, %v471, 0
    %v489 = vsel %vm317, %v472, 0
    %v492 = vsel %vm317, %v473, 0
    %v495 = vsel %vm317, %v474, 0
    %v498 = vsel %vm317, %v475, 0
    %v501 = vsel %vm317, %v476, 0
    %v504 = vsel %vm317, %v477, 0
    %v507 = vsel %vm317, %v478, 0
    %509 = vmatprep.subr.bf16.mxu0 0
    %510 = vmatpush1.bf16.msra.mxu0 %v483
    %511 = vmatprep.subr.bf16.mxu0 0
    %512 = vmatpush1.bf16.msra.mxu0 0
    %513 = vmatprep.subr.bf16.mxu0 0
    %514 = vmatpush1.bf16.msra.mxu0 0
    %515 = vmatprep.subr.bf16.mxu0 0
    %516 = vmatpush1.bf16.msra.mxu0 0
    %517 = vmatprep.subr.bf16.mxu0 0
    %518 = vmatpush1.bf16.msra.mxu0 0
    %519 = vmatprep.subr.bf16.mxu0 0
    %520 = vmatpush1.bf16.msra.mxu0 0
    %521 = vmatprep.subr.bf16.mxu0 0
    %522 = vmatpush1.bf16.msra.mxu0 0
    %523 = vmatprep.subr.bf16.mxu0 0
    %524 = vmatpush1.bf16.msra.mxu0 0
    %525 = vmatprep.subr.bf16.mxu0 0
    %526 = vmatpush1.bf16.msra.mxu0 0
    %527 = vmatprep.subr.bf16.mxu0 0
    %528 = vmatpush1.bf16.msra.mxu0 0
    %529 = vmatprep.subr.bf16.mxu0 0
    %530 = vmatpush1.bf16.msra.mxu0 0
    %531 = vmatprep.subr.bf16.mxu0 0
    %532 = vmatpush1.bf16.msra.mxu0 0
    %533 = vmatprep.subr.bf16.mxu0 0
    %534 = vmatpush1.bf16.msra.mxu0 0
    %535 = vmatprep.subr.bf16.mxu0 0
    %536 = vmatpush1.bf16.msra.mxu0 0
    %537 = vmatprep.subr.bf16.mxu0 0
    %538 = vmatpush1.bf16.msra.mxu0 0
    %539 = vmatprep.subr.bf16.mxu0 0
    %540 = vmatpush1.bf16.msra.mxu0 0
    %541 = vmatprep.mubr.bf16.mxu0 0
    %542 = vmatmul.mubr.bf16.gmra.mrb[0].mxu0 %v486
    %v543 = vpop.f32.mrb[0].mxu0
    %v544 = vadd.f32 %v377, %v543
    %v545 = vpop.f32.mrb[0].mxu0
    %v546 = vpop.f32.mrb[0].mxu0
    %v547 = vadd.f32 %v380, %v546
    %v548 = vpop.f32.mrb[0].mxu0
    %549 = vmatprep.mubr.bf16.mxu0 0
    %550 = vmatmul.mubr.bf16.gmra.mrb[0].mxu0 %v489
    %v551 = vpop.f32.mrb[0].mxu0
    %v552 = vadd.f32 %v385, %v551
    %v553 = vpop.f32.mrb[0].mxu0
    %v554 = vpop.f32.mrb[0].mxu0
    %v555 = vadd.f32 %v388, %v554
    %v556 = vpop.f32.mrb[0].mxu0
    %557 = vmatprep.mubr.bf16.mxu0 0
    %558 = vmatmul.mubr.bf16.gmra.mrb[0].mxu0 %v492
    %v559 = vpop.f32.mrb[0].mxu0
    %v560 = vadd.f32 %v393, %v559
    %v561 = vpop.f32.mrb[0].mxu0
    %v562 = vpop.f32.mrb[0].mxu0
    %v563 = vadd.f32 %v396, %v562
    %v564 = vpop.f32.mrb[0].mxu0
    %565 = vmatprep.mubr.bf16.mxu0 0
    %566 = vmatmul.mubr.bf16.gmra.mrb[0].mxu0 %v495
    %v567 = vpop.f32.mrb[0].mxu0
    %v568 = vadd.f32 %v401, %v567
    %v569 = vpop.f32.mrb[0].mxu0
    %v570 = vpop.f32.mrb[0].mxu0
    %v571 = vadd.f32 %v404, %v570
    %v572 = vpop.f32.mrb[0].mxu0
    %573 = vmatprep.mubr.bf16.mxu0 0
    %574 = vmatmul.mubr.bf16.gmra.mrb[0].mxu0 %v498
    %v575 = vpop.f32.mrb[0].mxu0
    %v576 = vadd.f32 %v409, %v575
    %v577 = vpop.f32.mrb[0].mxu0
    %v578 = vpop.f32.mrb[0].mxu0
    %v579 = vadd.f32 %v412, %v578
    %v580 = vpop.f32.mrb[0].mxu0
    %581 = vmatprep.mubr.bf16.mxu0 0
    %582 = vmatmul.mubr.bf16.gmra.mrb[0].mxu0 %v501
    %v583 = vpop.f32.mrb[0].mxu0
    %v584 = vadd.f32 %v417, %v583
    %v585 = vpop.f32.mrb[0].mxu0
    %v586 = vpop.f32.mrb[0].mxu0
    %v587 = vadd.f32 %v420, %v586
    %v588 = vpop.f32.mrb[0].mxu0
    %589 = vmatprep.mubr.bf16.mxu0 0
    %590 = vmatmul.mubr.bf16.gmra.mrb[0].mxu0 %v504
    %v591 = vpop.f32.mrb[0].mxu0
    %v592 = vadd.f32 %v425, %v591
    %v593 = vpop.f32.mrb[0].mxu0
    %v594 = vpop.f32.mrb[0].mxu0
    %v595 = vadd.f32 %v428, %v594
    %v596 = vpop.f32.mrb[0].mxu0
    %597 = vmatprep.mubr.bf16.mxu0 0
    %598 = vmatmul.mubr.bf16.gmra.mrb[0].mxu0 %v507
    %v599 = vpop.f32.mrb[0].mxu0
    %v600 = vadd.f32 %v433, %v599
    %v601 = vpop.f32.mrb[0].mxu0
    %v602 = vpop.f32.mrb[0].mxu0
    %v603 = vadd.f32 %v436, %v602
    %v604 = vpop.f32.mrb[0].mxu0
    %605 = vdwg.mxu0
    %v606 = vld [vmem:[%s1 + $0x10] sm:$0xf]
    %v607 = vld [vmem:[%s1 + $0x14] sm:$0xf]
    %v610 = vunpack.c.l.b16 %v36
    %v611 = vunpack.c.l.b16 %v54
    %v612 = vpack.c.b16 %v457, %v456
    %v613 = vpack.c.b16 %v459, %v458
    %v614 = vpack.c.b16 %v461, %v460
    %v615 = vpack.c.b16 %v610, %v462
    %v616 = vpack.c.b16 %v465, %v464
    %v617 = vpack.c.b16 %v467, %v466
    %v618 = vpack.c.b16 %v469, %v468
    %v619 = vpack.c.b16 %v611, %v470
    %v622 = vunpack.c.l.b16 %v606
    %v623 = vunpack.c.l.b16 %v607
    %v624 = vpack.c.b16 %v623, %v622
    %v627 = vsel %vm317, %v612, 0
    %v630 = vsel %vm317, %v613, 0
    %v633 = vsel %vm317, %v614, 0
    %v636 = vsel %vm317, %v615, 0
    %v639 = vsel %vm317, %v616, 0
    %v642 = vsel %vm317, %v617, 0
    %v645 = vsel %vm317, %v618, 0
    %v648 = vsel %vm317, %v619, 0
    %650 = vmatprep.subr.bf16.mxu0 0
    %651 = vmatpush1.bf16.msra.mxu0 %v624
    %652 = vmatprep.subr.bf16.mxu0 0
    %653 = vmatpush1.bf16.msra.mxu0 0
    %654 = vmatprep.subr.bf16.mxu0 0
    %655 = vmatpush1.bf16.msra.mxu0 0
    %656 = vmatprep.subr.bf16.mxu0 0
    %657 = vmatpush1.bf16.msra.mxu0 0
    %658 = vmatprep.subr.bf16.mxu0 0
    %659 = vmatpush1.bf16.msra.mxu0 0
    %660 = vmatprep.subr.bf16.mxu0 0
    %661 = vmatpush1.bf16.msra.mxu0 0
    %662 = vmatprep.subr.bf16.mxu0 0
    %663 = vmatpush1.bf16.msra.mxu0 0
    %664 = vmatprep.subr.bf16.mxu0 0
    %665 = vmatpush1.bf16.msra.mxu0 0
    %666 = vmatprep.subr.bf16.mxu0 0
    %667 = vmatpush1.bf16.msra.mxu0 0
    %668 = vmatprep.subr.bf16.mxu0 0
    %669 = vmatpush1.bf16.msra.mxu0 0
    %670 = vmatprep.subr.bf16.mxu0 0
    %671 = vmatpush1.bf16.msra.mxu0 0
    %672 = vmatprep.subr.bf16.mxu0 0
    %673 = vmatpush1.bf16.msra.mxu0 0
    %674 = vmatprep.subr.bf16.mxu0 0
    %675 = vmatpush1.bf16.msra.mxu0 0
    %676 = vmatprep.subr.bf16.mxu0 0
    %677 = vmatpush1.bf16.msra.mxu0 0
    %678 = vmatprep.subr.bf16.mxu0 0
    %679 = vmatpush1.bf16.msra.mxu0 0
    %680 = vmatprep.subr.bf16.mxu0 0
    %681 = vmatpush1.bf16.msra.mxu0 0
    %682 = vmatprep.mubr.bf16.mxu0 0
    %683 = vmatmul.mubr.bf16.gmra.mrb[0].mxu0 %v627
    %v684 = vpop.f32.mrb[0].mxu0
    %v685 = vadd.f32 0.0, %v684
    %v686 = vpop.f32.mrb[0].mxu0
    %v687 = vpop.f32.mrb[0].mxu0
    %v688 = vadd.f32 0.0, %v687
    %v689 = vpop.f32.mrb[0].mxu0
    %690 = vmatprep.mubr.bf16.mxu0 0
    %691 = vmatmul.mubr.bf16.gmra.mrb[0].mxu0 %v630
    %v692 = vpop.f32.mrb[0].mxu0
    %v693 = vadd.f32 0.0, %v692
    %v694 = vpop.f32.mrb[0].mxu0
    %v695 = vpop.f32.mrb[0].mxu0
    %v696 = vadd.f32 0.0, %v695
    %v697 = vpop.f32.mrb[0].mxu0
    %698 = vmatprep.mubr.bf16.mxu0 0
    %699 = vmatmul.mubr.bf16.gmra.mrb[0].mxu0 %v633
    %v700 = vpop.f32.mrb[0].mxu0
    %v701 = vadd.f32 0.0, %v700
    %v702 = vpop.f32.mrb[0].mxu0
    %v703 = vpop.f32.mrb[0].mxu0
    %v704 = vadd.f32 0.0, %v703
    %v705 = vpop.f32.mrb[0].mxu0
    %706 = vmatprep.mubr.bf16.mxu0 0
    %707 = vmatmul.mubr.bf16.gmra.mrb[0].mxu0 %v636
    %v708 = vpop.f32.mrb[0].mxu0
    %v709 = vadd.f32 0.0, %v708
    %v710 = vpop.f32.mrb[0].mxu0
    %v711 = vpop.f32.mrb[0].mxu0
    %v712 = vadd.f32 0.0, %v711
    %v713 = vpop.f32.mrb[0].mxu0
    %714 = vmatprep.mubr.bf16.mxu0 0
    %715 = vmatmul.mubr.bf16.gmra.mrb[0].mxu0 %v639
    %v716 = vpop.f32.mrb[0].mxu0
    %v717 = vadd.f32 0.0, %v716
    %v718 = vpop.f32.mrb[0].mxu0
    %v719 = vpop.f32.mrb[0].mxu0
    %v720 = vadd.f32 0.0, %v719
    %v721 = vpop.f32.mrb[0].mxu0
    %722 = vmatprep.mubr.bf16.mxu0 0
    %723 = vmatmul.mubr.bf16.gmra.mrb[0].mxu0 %v642
    %v724 = vpop.f32.mrb[0].mxu0
    %v725 = vadd.f32 0.0, %v724
    %v726 = vpop.f32.mrb[0].mxu0
    %v727 = vpop.f32.mrb[0].mxu0
    %v728 = vadd.f32 0.0, %v727
    %v729 = vpop.f32.mrb[0].mxu0
    %730 = vmatprep.mubr.bf16.mxu0 0
    %731 = vmatmul.mubr.bf16.gmra.mrb[0].mxu0 %v645
    %v732 = vpop.f32.mrb[0].mxu0
    %v733 = vadd.f32 0.0, %v732
    %v734 = vpop.f32.mrb[0].mxu0
    %v735 = vpop.f32.mrb[0].mxu0
    %v736 = vadd.f32 0.0, %v735
    %v737 = vpop.f32.mrb[0].mxu0
    %738 = vmatprep.mubr.bf16.mxu0 0
    %739 = vmatmul.mubr.bf16.gmra.mrb[0].mxu0 %v648
    %v740 = vpop.f32.mrb[0].mxu0
    %v741 = vadd.f32 0.0, %v740
    %v742 = vpop.f32.mrb[0].mxu0
    %v743 = vpop.f32.mrb[0].mxu0
    %v744 = vadd.f32 0.0, %v743
    %v745 = vpop.f32.mrb[0].mxu0
    %746 = vdwg.mxu0
    %v747 = vadd.f32 %v544, %v685
    %v748 = vadd.f32 %v547, %v688
    %v749 = vadd.f32 %v552, %v693
    %v750 = vadd.f32 %v555, %v696
    %v751 = vadd.f32 %v560, %v701
    %v752 = vadd.f32 %v563, %v704
    %v753 = vadd.f32 %v568, %v709
    %v754 = vadd.f32 %v571, %v712
    %v755 = vadd.f32 %v576, %v717
    %v756 = vadd.f32 %v579, %v720
    %v757 = vadd.f32 %v584, %v725
    %v758 = vadd.f32 %v587, %v728
    %v759 = vadd.f32 %v592, %v733
    %v760 = vadd.f32 %v595, %v736
    %v761 = vadd.f32 %v600, %v741
    %v762 = vadd.f32 %v603, %v744
    %v764 = vshrl.u32 %v36, 16
    %v766 = vrot.slane %v764, 4
    %v767 = vshll.u32 %v36, 16
    %v769 = vrot.slane %v767, 5
    %v770 = vor.u32 %v766, %v769
    %v771 = vrot.slane %v770, 4
    %v773 = vshll.u32 %v37, 16
    %v775 = vrot.slane %v773, 5
    %v776 = vsel %vm60, %v771, %v775
    %v778 = vshrl.u32 %v54, 16
    %v780 = vrot.slane %v778, 4
    %v781 = vshll.u32 %v54, 16
    %v783 = vrot.slane %v781, 5
    %v784 = vor.u32 %v780, %v783
    %v785 = vrot.slane %v784, 4
    %v787 = vshll.u32 %v55, 16
    %v789 = vrot.slane %v787, 5
    %v790 = vsel %vm60, %v785, %v789
    %v791 = vld [vmem:[%s1 + $0x18] sm:$0xf]
    %v792 = vld [vmem:[%s1 + $0x1c] sm:$0xf]
    %v793 = vunpack.c.l.b16 %v776
    %v794 = vunpack.c.l.b16 %v790
    %v795 = vpack.c.b16 %v289, %v288
    %v796 = vpack.c.b16 %v291, %v290
    %v797 = vpack.c.b16 %v293, %v292
    %v798 = vpack.c.b16 %v793, %v294
    %v799 = vpack.c.b16 %v297, %v296
    %v800 = vpack.c.b16 %v299, %v298
    %v801 = vpack.c.b16 %v301, %v300
    %v802 = vpack.c.b16 %v794, %v302
    %v805 = vunpack.c.l.b16 %v791
    %v806 = vunpack.c.l.b16 %v792
    %v807 = vpack.c.b16 %v806, %v805
    %v810 = vsel %vm317, %v795, 0
    %v813 = vsel %vm317, %v796, 0
    %v816 = vsel %vm317, %v797, 0
    %v819 = vsel %vm317, %v798, 0
    %v822 = vsel %vm317, %v799, 0
    %v825 = vsel %vm317, %v800, 0
    %v828 = vsel %vm317, %v801, 0
    %v831 = vsel %vm317, %v802, 0
    %833 = vmatprep.subr.bf16.mxu0 0
    %834 = vmatpush1.bf16.msra.mxu0 %v807
    %835 = vmatprep.subr.bf16.mxu0 0
    %836 = vmatpush1.bf16.msra.mxu0 0
    %837 = vmatprep.subr.bf16.mxu0 0
    %838 = vmatpush1.bf16.msra.mxu0 0
    %839 = vmatprep.subr.bf16.mxu0 0
    %840 = vmatpush1.bf16.msra.mxu0 0
    %841 = vmatprep.subr.bf16.mxu0 0
    %842 = vmatpush1.bf16.msra.mxu0 0
    %843 = vmatprep.subr.bf16.mxu0 0
    %844 = vmatpush1.bf16.msra.mxu0 0
    %845 = vmatprep.subr.bf16.mxu0 0
    %846 = vmatpush1.bf16.msra.mxu0 0
    %847 = vmatprep.subr.bf16.mxu0 0
    %848 = vmatpush1.bf16.msra.mxu0 0
    %849 = vmatprep.subr.bf16.mxu0 0
    %850 = vmatpush1.bf16.msra.mxu0 0
    %851 = vmatprep.subr.bf16.mxu0 0
    %852 = vmatpush1.bf16.msra.mxu0 0
    %853 = vmatprep.subr.bf16.mxu0 0
    %854 = vmatpush1.bf16.msra.mxu0 0
    %855 = vmatprep.subr.bf16.mxu0 0
    %856 = vmatpush1.bf16.msra.mxu0 0
    %857 = vmatprep.subr.bf16.mxu0 0
    %858 = vmatpush1.bf16.msra.mxu0 0
    %859 = vmatprep.subr.bf16.mxu0 0
    %860 = vmatpush1.bf16.msra.mxu0 0
    %861 = vmatprep.subr.bf16.mxu0 0
    %862 = vmatpush1.bf16.msra.mxu0 0
    %863 = vmatprep.subr.bf16.mxu0 0
    %864 = vmatpush1.bf16.msra.mxu0 0
    %865 = vmatprep.mubr.bf16.mxu0 0
    %866 = vmatmul.mubr.bf16.gmra.mrb[0].mxu0 %v810
    %v867 = vpop.f32.mrb[0].mxu0
    %v868 = vadd.f32 0.0, %v867
    %v869 = vpop.f32.mrb[0].mxu0
    %v870 = vpop.f32.mrb[0].mxu0
    %v871 = vadd.f32 0.0, %v870
    %v872 = vpop.f32.mrb[0].mxu0
    %873 = vmatprep.mubr.bf16.mxu0 0
    %874 = vmatmul.mubr.bf16.gmra.mrb[0].mxu0 %v813
    %v875 = vpop.f32.mrb[0].mxu0
    %v876 = vadd.f32 0.0, %v875
    %v877 = vpop.f32.mrb[0].mxu0
    %v878 = vpop.f32.mrb[0].mxu0
    %v879 = vadd.f32 0.0, %v878
    %v880 = vpop.f32.mrb[0].mxu0
    %881 = vmatprep.mubr.bf16.mxu0 0
    %882 = vmatmul.mubr.bf16.gmra.mrb[0].mxu0 %v816
    %v883 = vpop.f32.mrb[0].mxu0
    %v884 = vadd.f32 0.0, %v883
    %v885 = vpop.f32.mrb[0].mxu0
    %v886 = vpop.f32.mrb[0].mxu0
    %v887 = vadd.f32 0.0, %v886
    %v888 = vpop.f32.mrb[0].mxu0
    %889 = vmatprep.mubr.bf16.mxu0 0
    %890 = vmatmul.mubr.bf16.gmra.mrb[0].mxu0 %v819
    %v891 = vpop.f32.mrb[0].mxu0
    %v892 = vadd.f32 0.0, %v891
    %v893 = vpop.f32.mrb[0].mxu0
    %v894 = vpop.f32.mrb[0].mxu0
    %v895 = vadd.f32 0.0, %v894
    %v896 = vpop.f32.mrb[0].mxu0
    %897 = vmatprep.mubr.bf16.mxu0 0
    %898 = vmatmul.mubr.bf16.gmra.mrb[0].mxu0 %v822
    %v899 = vpop.f32.mrb[0].mxu0
    %v900 = vadd.f32 0.0, %v899
    %v901 = vpop.f32.mrb[0].mxu0
    %v902 = vpop.f32.mrb[0].mxu0
    %v903 = vadd.f32 0.0, %v902
    %v904 = vpop.f32.mrb[0].mxu0
    %905 = vmatprep.mubr.bf16.mxu0 0
    %906 = vmatmul.mubr.bf16.gmra.mrb[0].mxu0 %v825
    %v907 = vpop.f32.mrb[0].mxu0
    %v908 = vadd.f32 0.0, %v907
    %v909 = vpop.f32.mrb[0].mxu0
    %v910 = vpop.f32.mrb[0].mxu0
    %v911 = vadd.f32 0.0, %v910
    %v912 = vpop.f32.mrb[0].mxu0
    %913 = vmatprep.mubr.bf16.mxu0 0
    %914 = vmatmul.mubr.bf16.gmra.mrb[0].mxu0 %v828
    %v915 = vpop.f32.mrb[0].mxu0
    %v916 = vadd.f32 0.0, %v915
    %v917 = vpop.f32.mrb[0].mxu0
    %v918 = vpop.f32.mrb[0].mxu0
    %v919 = vadd.f32 0.0, %v918
    %v920 = vpop.f32.mrb[0].mxu0
    %921 = vmatprep.mubr.bf16.mxu0 0
    %922 = vmatmul.mubr.bf16.gmra.mrb[0].mxu0 %v831
    %v923 = vpop.f32.mrb[0].mxu0
    %v924 = vadd.f32 0.0, %v923
    %v925 = vpop.f32.mrb[0].mxu0
    %v926 = vpop.f32.mrb[0].mxu0
    %v927 = vadd.f32 0.0, %v926
    %v928 = vpop.f32.mrb[0].mxu0
    %929 = vdwg.mxu0
    %v930 = vadd.f32 %v747, %v868
    %v931 = vadd.f32 %v748, %v871
    %v932 = vadd.f32 %v749, %v876
    %v933 = vadd.f32 %v750, %v879
    %v934 = vadd.f32 %v751, %v884
    %v935 = vadd.f32 %v752, %v887
    %v936 = vadd.f32 %v753, %v892
    %v937 = vadd.f32 %v754, %v895
    %v938 = vadd.f32 %v755, %v900
    %v939 = vadd.f32 %v756, %v903
    %v940 = vadd.f32 %v757, %v908
    %v941 = vadd.f32 %v758, %v911
    %v942 = vadd.f32 %v759, %v916
    %v943 = vadd.f32 %v760, %v919
    %v944 = vadd.f32 %v761, %v924
    %v945 = vadd.f32 %v762, %v927
    %v946 = vld [vmem:[%s2] sm:$0x1]
    %v948 = vlaneseq
    %v949 = vshrl.u32 %v948, 7
    %v950 = vsub.s32 0, %v949
    %v951 = vrot.slane %v946, %v950
    %v953 = vadd.f32 %v930, %v951
    %v954 = vadd.f32 %v931, %v951
    %v955 = vadd.f32 %v932, %v951
    %v956 = vadd.f32 %v933, %v951
    %v957 = vadd.f32 %v934, %v951
    %v958 = vadd.f32 %v935, %v951
    %v959 = vadd.f32 %v936, %v951
    %v960 = vadd.f32 %v937, %v951
    %v961 = vadd.f32 %v938, %v951
    %v962 = vadd.f32 %v939, %v951
    %v963 = vadd.f32 %v940, %v951
    %v964 = vadd.f32 %v941, %v951
    %v965 = vadd.f32 %v942, %v951
    %v966 = vadd.f32 %v943, %v951
    %v967 = vadd.f32 %v944, %v951
    %v968 = vadd.f32 %v945, %v951
    %vm969 = vcmp.ge.f32.partialorder %v953, 0.0
    %vm970 = vcmp.ge.f32.partialorder %v954, 0.0
    %vm971 = vcmp.ge.f32.partialorder %v955, 0.0
    %vm972 = vcmp.ge.f32.partialorder %v956, 0.0
    %vm973 = vcmp.ge.f32.partialorder %v957, 0.0
    %vm974 = vcmp.ge.f32.partialorder %v958, 0.0
    %vm975 = vcmp.ge.f32.partialorder %v959, 0.0
    %vm976 = vcmp.ge.f32.partialorder %v960, 0.0
    %vm977 = vcmp.ge.f32.partialorder %v961, 0.0
    %vm978 = vcmp.ge.f32.partialorder %v962, 0.0
    %vm979 = vcmp.ge.f32.partialorder %v963, 0.0
    %vm980 = vcmp.ge.f32.partialorder %v964, 0.0
    %vm981 = vcmp.ge.f32.partialorder %v965, 0.0
    %vm982 = vcmp.ge.f32.partialorder %v966, 0.0
    %vm983 = vcmp.ge.f32.partialorder %v967, 0.0
    %vm984 = vcmp.ge.f32.partialorder %v968, 0.0
    %v985 = vmul.f32 %v953, 0.2
    %v986 = vmul.f32 %v954, 0.2
    %v987 = vmul.f32 %v955, 0.2
    %v988 = vmul.f32 %v956, 0.2
    %v989 = vmul.f32 %v957, 0.2
    %v990 = vmul.f32 %v958, 0.2
    %v991 = vmul.f32 %v959, 0.2
    %v992 = vmul.f32 %v960, 0.2
    %v993 = vmul.f32 %v961, 0.2
    %v994 = vmul.f32 %v962, 0.2
    %v995 = vmul.f32 %v963, 0.2
    %v996 = vmul.f32 %v964, 0.2
    %v997 = vmul.f32 %v965, 0.2
    %v998 = vmul.f32 %v966, 0.2
    %v999 = vmul.f32 %v967, 0.2
    %v1000 = vmul.f32 %v968, 0.2
    %v1001 = vsel %vm969, %v953, %v985
    %v1002 = vsel %vm970, %v954, %v986
    %v1003 = vsel %vm971, %v955, %v987
    %v1004 = vsel %vm972, %v956, %v988
    %v1005 = vsel %vm973, %v957, %v989
    %v1006 = vsel %vm974, %v958, %v990
    %v1007 = vsel %vm975, %v959, %v991
    %v1008 = vsel %vm976, %v960, %v992
    %v1009 = vsel %vm977, %v961, %v993
    %v1010 = vsel %vm978, %v962, %v994
    %v1011 = vsel %vm979, %v963, %v995
    %v1012 = vsel %vm980, %v964, %v996
    %v1013 = vsel %vm981, %v965, %v997
    %v1014 = vsel %vm982, %v966, %v998
    %v1015 = vsel %vm983, %v967, %v999
    %v1016 = vsel %vm984, %v968, %v1000
    %v1017 = vpack.c.bf16 %v1002, %v1001
    %v1018 = vpack.c.bf16 %v1004, %v1003
    %v1019 = vpack.c.bf16 %v1006, %v1005
    %v1020 = vpack.c.bf16 %v1008, %v1007
    %v1021 = vpack.c.bf16 %v1010, %v1009
    %v1022 = vpack.c.bf16 %v1012, %v1011
    %v1023 = vpack.c.bf16 %v1014, %v1013
    %v1024 = vpack.c.bf16 %v1016, %v1015
    %v1033 = vunpack.c.l.b16 %v1017
    %v1034 = vunpack.c.h.b16 %v1017
    %v1035 = vunpack.c.l.b16 %v1018
    %v1036 = vunpack.c.h.b16 %v1018
    %v1037 = vunpack.c.l.b16 %v1019
    %v1038 = vunpack.c.h.b16 %v1019
    %v1039 = vunpack.c.l.b16 %v1020
    %v1040 = vunpack.c.h.b16 %v1020
    %v1041 = vunpack.c.l.b16 %v1021
    %v1042 = vunpack.c.h.b16 %v1021
    %v1043 = vunpack.c.l.b16 %v1022
    %v1044 = vunpack.c.h.b16 %v1022
    %v1045 = vunpack.c.l.b16 %v1023
    %v1046 = vunpack.c.h.b16 %v1023
    %v1047 = vunpack.c.l.b16 %v1024
    %v1048 = vunpack.c.h.b16 %v1024
    %v1049 = vpack.c.b16 %v1033, %v1033
    %v1050 = vpack.c.b16 %v1034, %v1034
    %v1051 = vpack.c.b16 %v1035, %v1035
    %v1052 = vpack.c.b16 %v1036, %v1036
    %v1053 = vpack.c.b16 %v1037, %v1037
    %v1054 = vpack.c.b16 %v1038, %v1038
    %v1055 = vpack.c.b16 %v1039, %v1039
    %v1056 = vpack.c.b16 %v1040, %v1040
    %v1057 = vpack.c.b16 %v1041, %v1041
    %v1058 = vpack.c.b16 %v1042, %v1042
    %v1059 = vpack.c.b16 %v1043, %v1043
    %v1060 = vpack.c.b16 %v1044, %v1044
    %v1061 = vpack.c.b16 %v1045, %v1045
    %v1062 = vpack.c.b16 %v1046, %v1046
    %v1063 = vpack.c.b16 %v1047, %v1047
    %v1064 = vpack.c.b16 %v1048, %v1048
    %1081 = vst [vmem:[#allocation2] sm:$0xf] %v1049
    %1082 = vst [vmem:[#allocation2 + $0x4] sm:$0xf] %v1050
    %1083 = vst [vmem:[#allocation2 + $0x8] sm:$0xf] %v1051
    %1084 = vst [vmem:[#allocation2 + $0xc] sm:$0xf] %v1052
    %1085 = vst [vmem:[#allocation2 + $0x10] sm:$0xf] %v1053
    %1086 = vst [vmem:[#allocation2 + $0x14] sm:$0xf] %v1054
    %1087 = vst [vmem:[#allocation2 + $0x18] sm:$0xf] %v1055
    %1088 = vst [vmem:[#allocation2 + $0x1c] sm:$0xf] %v1056
    %1089 = vst [vmem:[#allocation2 + $0x20] sm:$0xf] %v1057
    %1090 = vst [vmem:[#allocation2 + $0x24] sm:$0xf] %v1058
    %1091 = vst [vmem:[#allocation2 + $0x28] sm:$0xf] %v1059
    %1092 = vst [vmem:[#allocation2 + $0x2c] sm:$0xf] %v1060
    %1093 = vst [vmem:[#allocation2 + $0x30] sm:$0xf] %v1061
    %1094 = vst [vmem:[#allocation2 + $0x34] sm:$0xf] %v1062
    %1095 = vst [vmem:[#allocation2 + $0x38] sm:$0xf] %v1063
    %1096 = vst [vmem:[#allocation2 + $0x3c] sm:$0xf] %v1064
    // Predicated region
    $region14: #{tpu_custom_call.1} parent=1 // pred_check
      _
    $region15: #{tpu_custom_call.1} parent=1 // pred_check_branch
      %1098 = sbr.rel (0) target = $region17
    $region16: #{tpu_custom_call.1} parent=1 // pred_region
      %s1100 = ssub.s32 1024, 1024
      %1101 = vsyncadd [#allocation3], %s1100
      %s1102 = sshll.u32 [#allocation2], 4
      %s1103 = int_to_ptr.vmem [resolvable:$true] %s1102
      %1108 = dma.vmem_to_hbm [thread:$0]  %s1103, 1024, %s3, [#allocation3], 64, 64, 4
    $region17: #{tpu_custom_call.1} parent=1 // pred_fallthru
      _
    // Predicated region
    $region18: #{tpu_custom_call.1} parent=1 // pred_check
      _
    $region19: #{tpu_custom_call.1} parent=1 // pred_check_branch
      %1110 = sbr.rel (0) target = $region21
    $region20: #{tpu_custom_call.1} parent=1 // pred_region
      %1111 = dma.done [#allocation3], 1024
    $region21: #{tpu_custom_call.1} parent=1 // pred_fallthru
      _
    %1112 = vsyncpa [#allocation3], 1

</llo_original>
